<compile_context>
chip_gen: v7x
topology: tpu7x:2x2x1
jax: 0.10.0
libtpu: 0.0.40
codegen_flags: <defaults>
</compile_context>

<pallas_src>
import jax
import jax.numpy as jnp
from jax.experimental import pallas as pl
from jax.experimental.pallas import tpu as pltpu

CLAMP_MIN = -0.8   # torch clamp_min value
CLAMP_MAX = -0.3   # torch clamp_max value
FEATURES = 256
_SMALL_B = 1024    # gridless path threshold (whole working set <~2.5 MiB f32)


def _kernel(x_ref, wt_ref, o_ref):
    # v1 = relu(x)
    v1 = jnp.maximum(x_ref[...], 0.0)
    w = wt_ref[...]                     # (K, N): already (in, out) layout
    # Narrow-dtype weights (e.g. bf16) -> cast activations to match so the MXU
    # takes its native path; accumulation stays f32 via preferred_element_type.
    if v1.dtype != w.dtype:
        v1 = v1.astype(w.dtype)
    v2 = jnp.dot(v1, w, preferred_element_type=jnp.float32)
    # v3 = clamp_min(v2, min); v4 = clamp_max(v3, max)
    o_ref[...] = jnp.minimum(jnp.maximum(v2, CLAMP_MIN), CLAMP_MAX).astype(o_ref.dtype)


def _cost(B, K, N, x_dtype, w_dtype, o_dtype):
    return pl.CostEstimate(
        flops=2 * B * K * N,
        transcendentals=0,
        bytes_accessed=(N * K * jnp.dtype(w_dtype).itemsize
                        + B * K * jnp.dtype(x_dtype).itemsize
                        + B * N * jnp.dtype(o_dtype).itemsize),
    )


def _pick_tm(B):
    # HBM-bound: big M tiles (512-1024) amortize the ~0.35 us per-step cost,
    # but keep grid length >= 2 so dimension_semantics=("parallel",) actually
    # feeds both v7x TensorCores.  Working set at tm=1024 (~4.5 MiB with
    # double-buffering) fits every generation's default scoped VMEM.
    tm = (B // 2) // 256 * 256
    return max(256, min(1024, tm))


def model_forward(x, weight, out_dtype=jnp.float32):
    """x: (B, K); weight: (N, K) in PyTorch (out, in) layout, any float dtype."""
    B, K = x.shape
    N = weight.shape[0]
    wt = jnp.transpose(weight)          # one tiny (256x256) transpose per call

    if B <= _SMALL_B:
        # Small-batch path (spec's B=1): whole working set fits VMEM on
        # v5e/v6e/v7x; single gridless invocation.
        # TODO(synk): at B=1 end-to-end latency is dispatch/weight-fetch bound;
        # a cross-call weight prefetch (P10) or fusion into the surrounding
        # kernel is the only real win — out of scope for a standalone op.
        return pl.pallas_call(
            _kernel,
            out_shape=jax.ShapeDtypeStruct((B, N), out_dtype),
            in_specs=[
                pl.BlockSpec(memory_space=pltpu.MemorySpace.VMEM),
                pl.BlockSpec(memory_space=pltpu.MemorySpace.VMEM),
            ],
            out_specs=pl.BlockSpec(memory_space=pltpu.MemorySpace.VMEM),
            cost_estimate=_cost(B, K, N, x.dtype, weight.dtype, out_dtype),
        )(x, wt)

    # Batched path: cdiv grid over the M (batch) axis, K/N whole.  Any B is
    # supported — pad M up to a tile multiple, slice back afterwards.
    tm = _pick_tm(B)
    n_tiles = pl.cdiv(B, tm)
    B_pad = n_tiles * tm
    x_in = x if B_pad == B else jnp.pad(x, ((0, B_pad - B), (0, 0)))

    out = pl.pallas_call(
        _kernel,
        out_shape=jax.ShapeDtypeStruct((B_pad, N), out_dtype),
        grid=(n_tiles,),
        in_specs=[
            pl.BlockSpec((tm, K), lambda i: (i, 0)),
            pl.BlockSpec((K, N), lambda i: (0, 0)),   # weight tile stays resident
        ],
        out_specs=pl.BlockSpec((tm, N), lambda i: (i, 0)),
        compiler_params=pltpu.CompilerParams(
            dimension_semantics=("parallel",)),
        cost_estimate=_cost(B_pad, K, N, x.dtype, weight.dtype, out_dtype),
    )(x_in, wt)
    return out if B_pad == B else out[:B]


if __name__ == "__main__":
    key = jax.random.PRNGKey(0)
    kx, kw = jax.random.split(key)
    # x1 = torch.randn(1, 256)
    x1 = jax.random.normal(kx, (1, FEATURES), dtype=jnp.float32)
    # torch.nn.Linear(256, 256, bias=False) weight, PyTorch (out, in) layout
    weight = (jax.random.normal(kw, (FEATURES, FEATURES), dtype=jnp.float32)
              * (1.0 / jnp.sqrt(FEATURES)))

    def ref_fn(x, w):
        return jnp.clip(jnp.maximum(x, 0.0) @ w.T, CLAMP_MIN, CLAMP_MAX)

    # --- f32 path at the spec's shape (B=1): exact module semantics ---
    out = jax.block_until_ready(model_forward(x1, weight))
    assert out.shape == (1, FEATURES)
    assert jnp.allclose(out, ref_fn(x1, weight), atol=1e-5, rtol=1e-5)

    # --- bf16 x + bf16 weight path (halves HBM input bytes; f32 accumulation) ---
    x_bf16 = x1.astype(jnp.bfloat16)
    w_bf16 = weight.astype(jnp.bfloat16)
    out_bf16 = jax.block_until_ready(model_forward(x_bf16, w_bf16))
    ref_bf16 = jnp.clip(
        jnp.dot(jnp.maximum(x_bf16, 0.0), w_bf16.T,
                preferred_element_type=jnp.float32),
        CLAMP_MIN, CLAMP_MAX)
    assert jnp.allclose(out_bf16, ref_bf16, atol=5e-3, rtol=5e-3)

    # --- batched path: B not a multiple of the tile (exercises cdiv grid + pad) ---
    B = 1300
    xb = jax.random.normal(jax.random.PRNGKey(1), (B, FEATURES), dtype=jnp.float32)
    out_b = jax.block_until_ready(model_forward(xb, weight))
    assert out_b.shape == (B, FEATURES)
    assert jnp.allclose(out_b, ref_fn(xb, weight), atol=1e-2, rtol=1e-2)

    # --- batched bf16-output path (halves output writeback bytes) ---
    out_b_bf16 = jax.block_until_ready(
        model_forward(xb, weight, out_dtype=jnp.bfloat16))
    assert out_b_bf16.dtype == jnp.bfloat16
    assert jnp.allclose(out_b_bf16.astype(jnp.float32), ref_fn(xb, weight),
                        atol=1e-2, rtol=1e-2)

    print("KERNEL_OK")
</pallas_src>

<mosaic_0001>
module attributes {stable_mosaic.version = 11 : i64} {
  func.func @_kernel(%arg0: memref<1x256xf32, #tpu.memory_space<vmem>>, %arg1: memref<256x256xf32, #tpu.memory_space<vmem>>, %arg2: memref<1x256xf32, #tpu.memory_space<vmem>>) attributes {dimension_semantics = [], scalar_prefetch = 0 : i64, scratch_operands = 0 : i64, tpu.core_type = #tpu.core_type<tc>} {
    %c0 = arith.constant 0 : index
    %c0_0 = arith.constant 0 : index
    %0 = vector.load %arg0[%c0, %c0_0] : memref<1x256xf32, #tpu.memory_space<vmem>>, vector<1x256xf32>
    %cst = arith.constant 0.000000e+00 : f32
    %1 = vector.broadcast %cst : f32 to vector<1x256xf32>
    %2 = arith.maximumf %0, %1 : vector<1x256xf32>
    %c0_1 = arith.constant 0 : index
    %c0_2 = arith.constant 0 : index
    %3 = vector.load %arg1[%c0_1, %c0_2] : memref<256x256xf32, #tpu.memory_space<vmem>>, vector<256x256xf32>
    %cst_3 = arith.constant dense<0.000000e+00> : vector<1x256xf32>
    %4 = tpu.matmul %2, %3, %cst_3 {dimension_numbers = #tpu.dot_dimension_numbers<[1], [0], [0], [1], [0, 0, 1, 1], [], []>} : vector<1x256xf32>, vector<256x256xf32>, vector<1x256xf32> -> vector<1x256xf32>
    %cst_4 = arith.constant -8.000000e-01 : f32
    %5 = vector.broadcast %cst_4 : f32 to vector<1x256xf32>
    %6 = arith.maximumf %4, %5 : vector<1x256xf32>
    %cst_5 = arith.constant -3.000000e-01 : f32
    %7 = vector.broadcast %cst_5 : f32 to vector<1x256xf32>
    %8 = arith.minimumf %6, %7 : vector<1x256xf32>
    %c0_6 = arith.constant 0 : index
    %c0_7 = arith.constant 0 : index
    %9 = vector.load %arg2[%c0_6, %c0_7] : memref<1x256xf32, #tpu.memory_space<vmem>>, vector<1x256xf32>
    tpu.vector_store %arg2[%c0_6, %c0_7], %8 {strides = array<i32>} : memref<1x256xf32, #tpu.memory_space<vmem>>, vector<1x256xf32>,
    return
  }
}

</mosaic_0001>

<llo_original>
// kernel: tpu_custom_call.1
$region0: #{tpu_custom_call.1}
  #allocation0 [shape = 'u32[]', space=smem, size = 0x4, offset = 0x4, fixed_abs, tag = 'smem constant byte address 0x4 - core index']
  #allocation1 [shape = 'u32[144,128]{1,0:T(1,128)}', space=vmem, size = 0x12000, scoped, tag = 'internal scratch']
  %s0 = inlined_call_operand.hbm [shape: f32[1,256], index: 0, kind: input, shape index: {}]
  %s1 = inlined_call_operand.hbm [shape: f32[256,256], index: 1, kind: input, shape index: {}]
  %s2 = inlined_call_operand.hbm [shape: f32[1,256], index: 2, kind: output, shape index: {}]
  %s3 = sld [smem:[#allocation0]]
  $region26: #{tpu_custom_call.1} parent=0
    _
  %s5 = ssub.s32 1, %s3
  %s6 = scalar_select 0, %s5, %s3
  $region1: #{tpu_custom_call.1} parent=0
    #allocation2 [shape = 'u8[1024]{0}', space=vmem, size = 0x400, scoped, tag = 'input window, operand 0, single buffered']
    #allocation3 [shape = 's32[1]{0}', space=sflag, size = 0x4, scoped, tag = 'scoped memory for tpu_custom_call.1']
    #allocation4 [shape = 's32[1]{0}', space=sflag, size = 0x4, scoped, tag = 'scoped memory for tpu_custom_call.1']
    #allocation5 [shape = 'u8[262144]{0}', space=vmem, size = 0x40000, scoped, tag = 'input window, operand 1, single buffered']
    #allocation6 [shape = 's32[1]{0}', space=sflag, size = 0x4, scoped, tag = 'scoped memory for tpu_custom_call.1']
    #allocation7 [shape = 'u8[1024]{0}', space=vmem, size = 0x400, scoped, tag = 'output window, operand 0, single buffered']
    %7 = vsyncpa [#allocation3], 0
    %8 = vsyncpa [#allocation6], 0
    %9 = vsyncpa [#allocation4], 0
    // Predicated region
    $region2: #{tpu_custom_call.1} parent=1 // pred_check
      _
    $region3: #{tpu_custom_call.1} parent=1 // pred_check_branch
      %11 = sbr.rel (0) target = $region5
    $region4: #{tpu_custom_call.1} parent=1 // pred_region
      %s13 = ssub.s32 32, 32
      %14 = vsyncadd [#allocation3], %s13
      %s16 = sshll.u32 [#allocation2], 4
      %s17 = int_to_ptr.vmem [resolvable:$true] %s16
      %19 = dma.hbm_to_vmem [thread:$0]  %s0, 32, %s17, [#allocation3]
    $region5: #{tpu_custom_call.1} parent=1 // pred_fallthru
      _
    // Predicated region
    $region6: #{tpu_custom_call.1} parent=1 // pred_check
      _
    $region7: #{tpu_custom_call.1} parent=1 // pred_check_branch
      %21 = sbr.rel (0) target = $region9
    $region8: #{tpu_custom_call.1} parent=1 // pred_region
      %s23 = ssub.s32 8192, 8192
      %24 = vsyncadd [#allocation6], %s23
      %s25 = sshll.u32 [#allocation5], 4
      %s26 = int_to_ptr.vmem [resolvable:$true] %s25
      %31 = dma.hbm_to_vmem [thread:$0]  %s1, 8192, %s26, [#allocation6], 256, 256, 16
    $region9: #{tpu_custom_call.1} parent=1 // pred_fallthru
      _
    // Predicated region
    $region10: #{tpu_custom_call.1} parent=1 // pred_check
      _
    $region11: #{tpu_custom_call.1} parent=1 // pred_check_branch
      %33 = sbr.rel (0) target = $region13
    $region12: #{tpu_custom_call.1} parent=1 // pred_region
      %34 = dma.done [#allocation3], 32
    $region13: #{tpu_custom_call.1} parent=1 // pred_fallthru
      _
    // Predicated region
    $region14: #{tpu_custom_call.1} parent=1 // pred_check
      _
    $region15: #{tpu_custom_call.1} parent=1 // pred_check_branch
      %36 = sbr.rel (0) target = $region17
    $region16: #{tpu_custom_call.1} parent=1 // pred_region
      %37 = dma.done [#allocation6], 8192
    $region17: #{tpu_custom_call.1} parent=1 // pred_fallthru
      _
    %v38 = vld [vmem:[#allocation2] sm:$0x3]
    %v39 = vmax.f32 %v38, 0.0
    %v40 = vld [vmem:[#allocation5] sm:$0xff]
    %v41 = vld [vmem:[#allocation5 + $0x8] sm:$0xff]
    %v42 = vld [vmem:[#allocation5 + $0x10] sm:$0xff]
    %v43 = vld [vmem:[#allocation5 + $0x18] sm:$0xff]
    %v44 = vld [vmem:[#allocation5 + $0x20] sm:$0xff]
    %v45 = vld [vmem:[#allocation5 + $0x28] sm:$0xff]
    %v46 = vld [vmem:[#allocation5 + $0x30] sm:$0xff]
    %v47 = vld [vmem:[#allocation5 + $0x38] sm:$0xff]
    %v48 = vld [vmem:[#allocation5 + $0x40] sm:$0xff]
    %v49 = vld [vmem:[#allocation5 + $0x48] sm:$0xff]
    %v50 = vld [vmem:[#allocation5 + $0x50] sm:$0xff]
    %v51 = vld [vmem:[#allocation5 + $0x58] sm:$0xff]
    %v52 = vld [vmem:[#allocation5 + $0x60] sm:$0xff]
    %v53 = vld [vmem:[#allocation5 + $0x68] sm:$0xff]
    %v54 = vld [vmem:[#allocation5 + $0x70] sm:$0xff]
    %v55 = vld [vmem:[#allocation5 + $0x78] sm:$0xff]
    %v56 = vld [vmem:[#allocation5 + $0x80] sm:$0xff]
    %v57 = vld [vmem:[#allocation5 + $0x88] sm:$0xff]
    %v58 = vld [vmem:[#allocation5 + $0x90] sm:$0xff]
    %v59 = vld [vmem:[#allocation5 + $0x98] sm:$0xff]
    %v60 = vld [vmem:[#allocation5 + $0xa0] sm:$0xff]
    %v61 = vld [vmem:[#allocation5 + $0xa8] sm:$0xff]
    %v62 = vld [vmem:[#allocation5 + $0xb0] sm:$0xff]
    %v63 = vld [vmem:[#allocation5 + $0xb8] sm:$0xff]
    %v64 = vld [vmem:[#allocation5 + $0xc0] sm:$0xff]
    %v65 = vld [vmem:[#allocation5 + $0xc8] sm:$0xff]
    %v66 = vld [vmem:[#allocation5 + $0xd0] sm:$0xff]
    %v67 = vld [vmem:[#allocation5 + $0xd8] sm:$0xff]
    %v68 = vld [vmem:[#allocation5 + $0xe0] sm:$0xff]
    %v69 = vld [vmem:[#allocation5 + $0xe8] sm:$0xff]
    %v70 = vld [vmem:[#allocation5 + $0xf0] sm:$0xff]
    %v71 = vld [vmem:[#allocation5 + $0xf8] sm:$0xff]
    %v72 = vld [vmem:[#allocation5 + $0x100] sm:$0xff]
    %v73 = vld [vmem:[#allocation5 + $0x108] sm:$0xff]
    %v74 = vld [vmem:[#allocation5 + $0x110] sm:$0xff]
    %v75 = vld [vmem:[#allocation5 + $0x118] sm:$0xff]
    %v76 = vld [vmem:[#allocation5 + $0x120] sm:$0xff]
    %v77 = vld [vmem:[#allocation5 + $0x128] sm:$0xff]
    %v78 = vld [vmem:[#allocation5 + $0x130] sm:$0xff]
    %v79 = vld [vmem:[#allocation5 + $0x138] sm:$0xff]
    %v80 = vld [vmem:[#allocation5 + $0x140] sm:$0xff]
    %v81 = vld [vmem:[#allocation5 + $0x148] sm:$0xff]
    %v82 = vld [vmem:[#allocation5 + $0x150] sm:$0xff]
    %v83 = vld [vmem:[#allocation5 + $0x158] sm:$0xff]
    %v84 = vld [vmem:[#allocation5 + $0x160] sm:$0xff]
    %v85 = vld [vmem:[#allocation5 + $0x168] sm:$0xff]
    %v86 = vld [vmem:[#allocation5 + $0x170] sm:$0xff]
    %v87 = vld [vmem:[#allocation5 + $0x178] sm:$0xff]
    %v88 = vld [vmem:[#allocation5 + $0x180] sm:$0xff]
    %v89 = vld [vmem:[#allocation5 + $0x188] sm:$0xff]
    %v90 = vld [vmem:[#allocation5 + $0x190] sm:$0xff]
    %v91 = vld [vmem:[#allocation5 + $0x198] sm:$0xff]
    %v92 = vld [vmem:[#allocation5 + $0x1a0] sm:$0xff]
    %v93 = vld [vmem:[#allocation5 + $0x1a8] sm:$0xff]
    %v94 = vld [vmem:[#allocation5 + $0x1b0] sm:$0xff]
    %v95 = vld [vmem:[#allocation5 + $0x1b8] sm:$0xff]
    %v96 = vld [vmem:[#allocation5 + $0x1c0] sm:$0xff]
    %v97 = vld [vmem:[#allocation5 + $0x1c8] sm:$0xff]
    %v98 = vld [vmem:[#allocation5 + $0x1d0] sm:$0xff]
    %v99 = vld [vmem:[#allocation5 + $0x1d8] sm:$0xff]
    %v100 = vld [vmem:[#allocation5 + $0x1e0] sm:$0xff]
    %v101 = vld [vmem:[#allocation5 + $0x1e8] sm:$0xff]
    %v102 = vld [vmem:[#allocation5 + $0x1f0] sm:$0xff]
    %v103 = vld [vmem:[#allocation5 + $0x1f8] sm:$0xff]
    %v105 = vlaneseq
    %v106 = vshrl.u32 %v105, 7
    %v107 = vsub.s32 0, %v106
    %v108 = vrot.slane %v39, %v107
    %v109 = vlaneseq
    %v110 = vshrl.u32 %v109, 7
    %v111 = vsub.s32 1, %v110
    %v112 = vrot.slane %v39, %v111
    %115 = vmatprep.subr.mxu0 %v41
    %116 = vmatpush1.msra.mxu0 %v40
    %117 = vmatprep.subr.mxu0 %v43
    %118 = vmatpush1.msra.mxu0 %v42
    %119 = vmatprep.subr.mxu0 %v45
    %120 = vmatpush1.msra.mxu0 %v44
    %121 = vmatprep.subr.mxu0 %v47
    %122 = vmatpush1.msra.mxu0 %v46
    %123 = vmatprep.subr.mxu0 %v49
    %124 = vmatpush1.msra.mxu0 %v48
    %125 = vmatprep.subr.mxu0 %v51
    %126 = vmatpush1.msra.mxu0 %v50
    %127 = vmatprep.subr.mxu0 %v53
    %128 = vmatpush1.msra.mxu0 %v52
    %129 = vmatprep.subr.mxu0 %v55
    %130 = vmatpush1.msra.mxu0 %v54
    %131 = vmatprep.subr.mxu0 %v57
    %132 = vmatpush1.msra.mxu0 %v56
    %133 = vmatprep.subr.mxu0 %v59
    %134 = vmatpush1.msra.mxu0 %v58
    %135 = vmatprep.subr.mxu0 %v61
    %136 = vmatpush1.msra.mxu0 %v60
    %137 = vmatprep.subr.mxu0 %v63
    %138 = vmatpush1.msra.mxu0 %v62
    %139 = vmatprep.subr.mxu0 %v65
    %140 = vmatpush1.msra.mxu0 %v64
    %141 = vmatprep.subr.mxu0 %v67
    %142 = vmatpush1.msra.mxu0 %v66
    %143 = vmatprep.subr.mxu0 %v69
    %144 = vmatpush1.msra.mxu0 %v68
    %145 = vmatprep.subr.mxu0 %v71
    %146 = vmatpush1.msra.mxu0 %v70
    %147 = vmatprep.subr.mxu0 %v73
    %148 = vmatpush1.msra.mxu0 %v72
    %149 = vmatprep.subr.mxu0 %v75
    %150 = vmatpush1.msra.mxu0 %v74
    %151 = vmatprep.subr.mxu0 %v77
    %152 = vmatpush1.msra.mxu0 %v76
    %153 = vmatprep.subr.mxu0 %v79
    %154 = vmatpush1.msra.mxu0 %v78
    %155 = vmatprep.subr.mxu0 %v81
    %156 = vmatpush1.msra.mxu0 %v80
    %157 = vmatprep.subr.mxu0 %v83
    %158 = vmatpush1.msra.mxu0 %v82
    %159 = vmatprep.subr.mxu0 %v85
    %160 = vmatpush1.msra.mxu0 %v84
    %161 = vmatprep.subr.mxu0 %v87
    %162 = vmatpush1.msra.mxu0 %v86
    %163 = vmatprep.subr.mxu0 %v89
    %164 = vmatpush1.msra.mxu0 %v88
    %165 = vmatprep.subr.mxu0 %v91
    %166 = vmatpush1.msra.mxu0 %v90
    %167 = vmatprep.subr.mxu0 %v93
    %168 = vmatpush1.msra.mxu0 %v92
    %169 = vmatprep.subr.mxu0 %v95
    %170 = vmatpush1.msra.mxu0 %v94
    %171 = vmatprep.subr.mxu0 %v97
    %172 = vmatpush1.msra.mxu0 %v96
    %173 = vmatprep.subr.mxu0 %v99
    %174 = vmatpush1.msra.mxu0 %v98
    %175 = vmatprep.subr.mxu0 %v101
    %176 = vmatpush1.msra.mxu0 %v100
    %177 = vmatprep.subr.mxu0 %v103
    %178 = vmatpush1.msra.mxu0 %v102
    %179 = vmatprep.mubr.f32.mxu0 %v112
    %180 = vmatmul.mubr.f32.gmra.mrb[0].mxu0 %v108
    %v181 = vpop.f32.mrb[0].mxu0
    %v182 = vadd.f32 0.0, %v181
    %v183 = vpop.f32.mrb[0].mxu0
    %v184 = vadd.f32 0.0, %v183
    %185 = vdwg.mxu0
    %v186 = vmax.f32 %v182, -0.8
    %v187 = vmax.f32 %v184, -0.8
    %v188 = vmin.f32 %v186, -0.3
    %v189 = vmin.f32 %v187, -0.3
    %v192 = vcombine.low %v188, %v189
    %v194 = vunpack.c.l.s4 1966171168
    %v195 = vunpack.c.0.s8 %v194
    %v196 = vlaneseq
    %v197 = vshrl.u32 %v196, 7
    %v198 = vsub.s32 %v195, %v197
    %v199 = vrot.slane %v192, %v198
    %v201 = vunpack.c.l.s4 1966171168
    %v202 = vunpack.c.0.s8 %v201
    %v203 = vlaneseq
    %v204 = vshrl.u32 %v203, 7
    %v205 = vsub.s32 %v202, %v204
    %v206 = vrot.slane %v199, %v205
    %v208 = vlaneseq
    %vm209 = vcmp.ge.s32.totalorder %v208, 0
    %vm210 = vcmp.lt.s32.totalorder %v208, 256
    %vm211 = vmand %vm209, %vm210
    %212 = vst.msk [vmem:[#allocation7] sm:$0x3] %vm211, %v206
    // Predicated region
    $region18: #{tpu_custom_call.1} parent=1 // pred_check
      _
    $region19: #{tpu_custom_call.1} parent=1 // pred_check_branch
      %214 = sbr.rel (0) target = $region21
    $region20: #{tpu_custom_call.1} parent=1 // pred_region
      %s216 = ssub.s32 32, 32
      %217 = vsyncadd [#allocation4], %s216
      %s219 = sshll.u32 [#allocation7], 4
      %s220 = int_to_ptr.vmem [resolvable:$true] %s219
      %222 = dma.vmem_to_hbm [thread:$0]  %s220, 32, %s2, [#allocation4]
    $region21: #{tpu_custom_call.1} parent=1 // pred_fallthru
      _
    // Predicated region
    $region22: #{tpu_custom_call.1} parent=1 // pred_check
      _
    $region23: #{tpu_custom_call.1} parent=1 // pred_check_branch
      %224 = sbr.rel (0) target = $region25
    $region24: #{tpu_custom_call.1} parent=1 // pred_region
      %225 = dma.done [#allocation4], 32
    $region25: #{tpu_custom_call.1} parent=1 // pred_fallthru
      _
    %226 = vsyncpa [#allocation3], 1
    %227 = vsyncpa [#allocation6], 1
    %228 = vsyncpa [#allocation4], 1

</llo_original>
